<compile_context>
chip_gen: v7x
topology: tpu7x:2x2x1
jax: 0.10.0
libtpu: 0.0.40
codegen_flags: <defaults>
</compile_context>

<pallas_src>
import functools

import jax
import jax.numpy as jnp
from jax.experimental import pallas as pl
from jax.experimental.pallas import tpu as pltpu


# ----------------------------------------------------------------------------
# Kernel
# ----------------------------------------------------------------------------
def _kd_kl_div_kernel(pred_ref, soft_ref, out_ref, *, inv_T, scale):
    """Per-row KD KL loss for one (TN, C) tile -> (TN, 1) output tile."""
    p = pred_ref[...].astype(jnp.float32) * inv_T
    s = soft_ref[...].astype(jnp.float32) * inv_T

    # teacher side: softmax statistics (never materialize softmax itself)
    s_shift = s - jnp.max(s, axis=1, keepdims=True)
    s_exp = jnp.exp(s_shift)
    s_sum = jnp.sum(s_exp, axis=1, keepdims=True)                      # (TN, 1)

    # student side: log_softmax statistics
    p_shift = p - jnp.max(p, axis=1, keepdims=True)
    p_lse = jnp.log(jnp.sum(jnp.exp(p_shift), axis=1, keepdims=True))  # (TN, 1)

    # sum_c target*(log_target - log_pred)
    #   = (1/s_sum) * sum_c s_exp*(s_shift - p_shift) + p_lse - log(s_sum)
    num = jnp.sum(s_exp * (s_shift - p_shift), axis=1, keepdims=True)  # (TN, 1)
    row = num / s_sum + p_lse - jnp.log(s_sum)                         # (TN, 1)

    out_ref[...] = row * jnp.float32(scale)


# ----------------------------------------------------------------------------
# Tiling / wrapper
# ----------------------------------------------------------------------------
_VMEM_TILE_BUDGET = 28 * 1024 * 1024   # under the 40 MiB scoped limit we request


def _choose_tile_n(N, C, itemsize):
    # 2 inputs x 2 pipeline buffers at native dtype + ~6 live f32 temporaries.
    per_row_bytes = C * (4 * itemsize + 6 * 4)
    tn = _VMEM_TILE_BUDGET // max(per_row_bytes, 1)
    tn = min(tn, 2048)
    if tn >= N:
        return N                              # whole array as one block (legal)
    tn = max(16, (tn // 16) * 16)             # multiple of 16: f32 & bf16 safe
    return min(tn, N)


def kd_kl_div_rowwise(pred, soft_label, *, T, class_reduction='mean',
                      tile_n=None):
    """Per-sample KD KL loss, shape (N,), computed in a Pallas kernel."""
    assert pred.shape == soft_label.shape
    N, C = pred.shape
    itemsize = jnp.dtype(pred.dtype).itemsize
    TN = tile_n if tile_n is not None else _choose_tile_n(N, C, itemsize)
    grid_n = pl.cdiv(N, TN)

    scale = float(T) * float(T)
    if class_reduction == 'mean':
        scale /= float(C)
    elif class_reduction != 'sum':
        raise NotImplementedError(class_reduction)

    kernel = functools.partial(
        _kd_kl_div_kernel, inv_T=1.0 / float(T), scale=scale)

    cost = pl.CostEstimate(
        flops=8 * N * C,
        transcendentals=2 * N * C,
        bytes_accessed=2 * N * C * itemsize + N * 4,
    )

    out = pl.pallas_call(
        kernel,
        out_shape=jax.ShapeDtypeStruct((N, 1), jnp.float32),
        grid_spec=pltpu.PrefetchScalarGridSpec(
            num_scalar_prefetch=0,
            grid=(grid_n,),
            in_specs=[
                pl.BlockSpec((TN, C), lambda i: (i, 0)),
                pl.BlockSpec((TN, C), lambda i: (i, 0)),
            ],
            out_specs=pl.BlockSpec((TN, 1), lambda i: (i, 0)),
        ),
        compiler_params=pltpu.CompilerParams(
            dimension_semantics=("parallel",),
            vmem_limit_bytes=40 * 1024 * 1024,
        ),
        cost_estimate=cost,
    )(pred, soft_label)          # native dtype in; upcast happens in-kernel
    return out[:, 0]


# ----------------------------------------------------------------------------
# Module (forward only)
# ----------------------------------------------------------------------------
class KnowledgeDistillationKLDivLoss:
    """JAX/Pallas port of the PyTorch module (forward only)."""

    def __init__(self, class_reduction='mean', reduction='mean',
                 loss_weight=1.0, T=10):
        assert T >= 1
        self.class_reduction = class_reduction
        self.reduction = reduction
        self.loss_weight = loss_weight
        self.T = T

    def __call__(self, pred, soft_label, weight=None, avg_factor=None,
                 reduction_override=None):
        assert reduction_override in (None, 'none', 'mean', 'sum')
        reduction = reduction_override if reduction_override else self.reduction

        # Hot path in Pallas: softmax / log_softmax / fused KL / class reduction.
        # TODO(synk): detach_target is an autodiff concept; forward value is
        # identical, so it is a no-op in this forward-only port.
        loss = kd_kl_div_rowwise(
            pred, soft_label, T=self.T, class_reduction=self.class_reduction)

        # weighted_loss / weight_reduce_loss glue (mmdet semantics)
        if weight is not None:
            loss = loss * weight.astype(loss.dtype)
        if avg_factor is None:
            if reduction == 'mean':
                loss = jnp.mean(loss)
            elif reduction == 'sum':
                loss = jnp.sum(loss)
            # 'none' -> per-sample
        else:
            if reduction == 'mean':
                loss = jnp.sum(loss) / avg_factor
            elif reduction != 'none':
                raise ValueError(
                    'avg_factor can not be used with reduction="sum"')
        return self.loss_weight * loss


# ----------------------------------------------------------------------------
# Reference + tests
# ----------------------------------------------------------------------------
def _reference_rowwise(pred, soft_label, T, class_reduction='mean'):
    pred = pred.astype(jnp.float32)
    soft_label = soft_label.astype(jnp.float32)
    target = jax.nn.softmax(soft_label / T, axis=1)
    logp = jax.nn.log_softmax(pred / T, axis=1)
    kl = target * (jnp.log(target) - logp)
    row = kl.mean(1) if class_reduction == 'mean' else kl.sum(1)
    return row * (T * T)


if __name__ == "__main__":
    key = jax.random.PRNGKey(0)
    k1, k2, k3, k4 = jax.random.split(key, 4)

    # --- case 1: small (N, n+1) logits, module path, 'mean' reduction -------
    N, C = 8, 32
    pred = jax.random.normal(k1, (N, C), dtype=jnp.float32) * 2.0
    soft = jax.random.normal(k2, (N, C), dtype=jnp.float32) * 2.0

    loss_mod = KnowledgeDistillationKLDivLoss(
        class_reduction='mean', reduction='mean', loss_weight=1.0, T=10)
    out = jax.block_until_ready(loss_mod(pred, soft))
    ref = jnp.mean(_reference_rowwise(pred, soft, 10.0, 'mean'))
    assert jnp.allclose(out, ref, atol=2e-5, rtol=1e-4), (out, ref)

    # 'none' reduction path (per-sample loss)
    out_none = jax.block_until_ready(
        loss_mod(pred, soft, reduction_override='none'))
    ref_none = _reference_rowwise(pred, soft, 10.0, 'mean')
    assert out_none.shape == (N,)
    assert jnp.allclose(out_none, ref_none, atol=2e-5, rtol=1e-4)

    # --- case 2: multi-tile grid (exercises N-tiling / pipelining) ----------
    N2, C2 = 64, 128
    pred2 = jax.random.normal(k3, (N2, C2), dtype=jnp.float32)
    soft2 = jax.random.normal(k4, (N2, C2), dtype=jnp.float32)
    row2 = jax.block_until_ready(
        kd_kl_div_rowwise(pred2, soft2, T=10, class_reduction='sum', tile_n=16))
    ref2 = _reference_rowwise(pred2, soft2, 10.0, 'sum')
    assert jnp.allclose(row2, ref2, atol=2e-5, rtol=1e-4)

    # --- case 3: bf16 inputs (native-dtype DMA, in-kernel upcast) -----------
    pred_bf = pred2.astype(jnp.bfloat16)
    soft_bf = soft2.astype(jnp.bfloat16)
    row_bf = jax.block_until_ready(
        kd_kl_div_rowwise(pred_bf, soft_bf, T=10, class_reduction='mean'))
    ref_bf = _reference_rowwise(pred_bf, soft_bf, 10.0, 'mean')
    assert jnp.allclose(row_bf, ref_bf, atol=1e-4, rtol=1e-3)

    print("KERNEL_OK")
</pallas_src>

<mosaic_0001>
module attributes {stable_mosaic.version = 11 : i64} {
  func.func @_kd_kl_div_kernel(%arg0: i32, %arg1: memref<8x32xf32, #tpu.memory_space<vmem>>, %arg2: memref<8x32xf32, #tpu.memory_space<vmem>>, %arg3: memref<8x1xf32, #tpu.memory_space<vmem>>) attributes {dimension_semantics = [#tpu.dimension_semantics<parallel>], iteration_bounds = array<i64: 1>, scalar_prefetch = 0 : i64, scratch_operands = 0 : i64, tpu.core_type = #tpu.core_type<tc>, window_params = [{transform_indices = @transform_0, window_bounds = array<i64: 8, 32>}, {transform_indices = @transform_1, window_bounds = array<i64: 8, 32>}, {transform_indices = @transform_2, window_bounds = array<i64: 8, 1>}]} {
    %c0 = arith.constant 0 : index
    %c0_0 = arith.constant 0 : index
    %0 = vector.load %arg1[%c0, %c0_0] : memref<8x32xf32, #tpu.memory_space<vmem>>, vector<8x32xf32>
    %cst = arith.constant 1.000000e-01 : f32
    %1 = vector.broadcast %cst : f32 to vector<8x32xf32>
    %2 = arith.mulf %0, %1 : vector<8x32xf32>
    %c0_1 = arith.constant 0 : index
    %c0_2 = arith.constant 0 : index
    %3 = vector.load %arg2[%c0_1, %c0_2] : memref<8x32xf32, #tpu.memory_space<vmem>>, vector<8x32xf32>
    %cst_3 = arith.constant 1.000000e-01 : f32
    %4 = vector.broadcast %cst_3 : f32 to vector<8x32xf32>
    %5 = arith.mulf %3, %4 : vector<8x32xf32>
    %cst_4 = arith.constant dense<0xFF800000> : vector<8xf32>
    %6 = vector.multi_reduction <maximumf>, %5, %cst_4 [1] : vector<8x32xf32> to vector<8xf32>
    %7 = vector.shape_cast %6 : vector<8xf32> to vector<8x1xf32>
    %8 = vector.broadcast %7 : vector<8x1xf32> to vector<8x32xf32>
    %9 = arith.subf %5, %8 : vector<8x32xf32>
    %10 = math.exp %9 : vector<8x32xf32>
    %cst_5 = arith.constant dense<0.000000e+00> : vector<8xf32>
    %11 = vector.multi_reduction <add>, %10, %cst_5 [1] : vector<8x32xf32> to vector<8xf32>
    %12 = vector.shape_cast %11 : vector<8xf32> to vector<8x1xf32>
    %cst_6 = arith.constant dense<0xFF800000> : vector<8xf32>
    %13 = vector.multi_reduction <maximumf>, %2, %cst_6 [1] : vector<8x32xf32> to vector<8xf32>
    %14 = vector.shape_cast %13 : vector<8xf32> to vector<8x1xf32>
    %15 = vector.broadcast %14 : vector<8x1xf32> to vector<8x32xf32>
    %16 = arith.subf %2, %15 : vector<8x32xf32>
    %17 = math.exp %16 : vector<8x32xf32>
    %cst_7 = arith.constant dense<0.000000e+00> : vector<8xf32>
    %18 = vector.multi_reduction <add>, %17, %cst_7 [1] : vector<8x32xf32> to vector<8xf32>
    %19 = vector.shape_cast %18 : vector<8xf32> to vector<8x1xf32>
    %20 = math.log %19 : vector<8x1xf32>
    %21 = arith.subf %9, %16 : vector<8x32xf32>
    %22 = arith.mulf %10, %21 : vector<8x32xf32>
    %cst_8 = arith.constant dense<0.000000e+00> : vector<8xf32>
    %23 = vector.multi_reduction <add>, %22, %cst_8 [1] : vector<8x32xf32> to vector<8xf32>
    %24 = vector.shape_cast %23 : vector<8xf32> to vector<8x1xf32>
    %25 = arith.divf %24, %12 : vector<8x1xf32>
    %26 = arith.addf %25, %20 : vector<8x1xf32>
    %27 = math.log %12 : vector<8x1xf32>
    %28 = arith.subf %26, %27 : vector<8x1xf32>
    %cst_9 = arith.constant 3.125000e+00 : f32
    %29 = vector.broadcast %cst_9 : f32 to vector<8x1xf32>
    %30 = arith.mulf %28, %29 : vector<8x1xf32>
    %c0_10 = arith.constant 0 : index
    %c0_11 = arith.constant 0 : index
    %31 = vector.load %arg3[%c0_10, %c0_11] : memref<8x1xf32, #tpu.memory_space<vmem>>, vector<8x1xf32>
    tpu.vector_store %arg3[%c0_10, %c0_11], %30 {strides = array<i32>} : memref<8x1xf32, #tpu.memory_space<vmem>>, vector<8x1xf32>,
    return
  }
  func.func @transform_0(%arg0: i32) -> (i32, i32) {
    %c0_i32 = arith.constant 0 : i32
    %c0_i32_0 = arith.constant 0 : i32
    return %arg0, %c0_i32 : i32, i32
  }
  func.func @transform_1(%arg0: i32) -> (i32, i32) {
    %c0_i32 = arith.constant 0 : i32
    %c0_i32_0 = arith.constant 0 : i32
    return %arg0, %c0_i32 : i32, i32
  }
  func.func @transform_2(%arg0: i32) -> (i32, i32) {
    %c0_i32 = arith.constant 0 : i32
    %c0_i32_0 = arith.constant 0 : i32
    return %arg0, %c0_i32 : i32, i32
  }
}

</mosaic_0001>

<llo_original>
// kernel: tpu_custom_call.1
$region0: #{tpu_custom_call.1}
  #allocation0 [shape = 'u32[]', space=smem, size = 0x4, offset = 0x4, fixed_abs, tag = 'smem constant byte address 0x4 - core index']
  #allocation1 [shape = 'u32[144,128]{1,0:T(1,128)}', space=vmem, size = 0x12000, scoped, tag = 'internal scratch']
  %s0 = inlined_call_operand.hbm [shape: f32[8,32], index: 0, kind: input, shape index: {}]
  %s1 = inlined_call_operand.hbm [shape: f32[8,32], index: 1, kind: input, shape index: {}]
  %s2 = inlined_call_operand.vmem [shape: f32[8,1], index: 2, kind: output, shape index: {}]
  %s3 = sld [smem:[#allocation0]]
  $region26: #{tpu_custom_call.1} parent=0
    _
  %s5 = ssub.s32 1, %s3
  %s6 = scalar_select 0, %s5, %s3
  $region1: #{tpu_custom_call.1} parent=0
    #allocation2 [shape = 'u8[4096]{0}', space=vmem, size = 0x1000, scoped, tag = 'input window, operand 0, single buffered']
    #allocation3 [shape = 's32[1]{0}', space=sflag, size = 0x4, scoped, tag = 'scoped memory for tpu_custom_call.1']
    #allocation4 [shape = 'u8[4096]{0}', space=vmem, size = 0x1000, scoped, tag = 'input window, operand 1, single buffered']
    #allocation5 [shape = 's32[1]{0}', space=sflag, size = 0x4, scoped, tag = 'scoped memory for tpu_custom_call.1']
    %7 = vsyncpa [#allocation3], 0
    %8 = vsyncpa [#allocation5], 0
    // Predicated region
    $region2: #{tpu_custom_call.1} parent=1 // pred_check
      _
    $region3: #{tpu_custom_call.1} parent=1 // pred_check_branch
      %10 = sbr.rel (0) target = $region5
    $region4: #{tpu_custom_call.1} parent=1 // pred_region
      %s12 = ssub.s32 128, 128
      %13 = vsyncadd [#allocation3], %s12
      %s15 = sshll.u32 [#allocation2], 4
      %s16 = int_to_ptr.vmem [resolvable:$true] %s15
      %18 = dma.hbm_to_vmem [thread:$0]  %s0, 128, %s16, [#allocation3]
    $region5: #{tpu_custom_call.1} parent=1 // pred_fallthru
      _
    // Predicated region
    $region6: #{tpu_custom_call.1} parent=1 // pred_check
      _
    $region7: #{tpu_custom_call.1} parent=1 // pred_check_branch
      %20 = sbr.rel (0) target = $region9
    $region8: #{tpu_custom_call.1} parent=1 // pred_region
      %s22 = ssub.s32 128, 128
      %23 = vsyncadd [#allocation5], %s22
      %s25 = sshll.u32 [#allocation4], 4
      %s26 = int_to_ptr.vmem [resolvable:$true] %s25
      %28 = dma.hbm_to_vmem [thread:$0]  %s1, 128, %s26, [#allocation5]
    $region9: #{tpu_custom_call.1} parent=1 // pred_fallthru
      _
    // Predicated region
    $region10: #{tpu_custom_call.1} parent=1 // pred_check
      _
    $region11: #{tpu_custom_call.1} parent=1 // pred_check_branch
      %30 = sbr.rel (0) target = $region13
    $region12: #{tpu_custom_call.1} parent=1 // pred_region
      %31 = dma.done [#allocation3], 128
    $region13: #{tpu_custom_call.1} parent=1 // pred_fallthru
      _
    // Predicated region
    $region14: #{tpu_custom_call.1} parent=1 // pred_check
      _
    $region15: #{tpu_custom_call.1} parent=1 // pred_check_branch
      %33 = sbr.rel (0) target = $region17
    $region16: #{tpu_custom_call.1} parent=1 // pred_region
      %34 = dma.done [#allocation5], 128
    $region17: #{tpu_custom_call.1} parent=1 // pred_fallthru
      _
    %v35 = vld [vmem:[#allocation2] sm:$0xff]
    %v36 = vmul.f32 %v35, 0.1
    %v37 = vld [vmem:[#allocation4] sm:$0xff]
    %v38 = vmul.f32 %v37, 0.1
    %vm39 = vcmask 261120
    %v40 = vsel %vm39, %v38, -inf
    %41 = vmax.xlane.f32.xlu0 %v40
    %v42 = vpop.xlane.xlu0 %41
    %v43 = vsub.f32 %v38, %v42
    %v44 = vmul.f32 %v43, 1.442695
    %v45 = vpow.pop %v44
    %v46 = vsel %vm39, %v45, 0.0
    %47 = vadd.xlane.f32.xlu0 %v46
    %v48 = vpop.xlane.xlu0 %47
    %v49 = vsel %vm39, %v36, -inf
    %50 = vmax.xlane.f32.xlu0 %v49
    %v51 = vpop.xlane.xlu0 %50
    %v52 = vsub.f32 %v36, %v51
    %v53 = vmul.f32 %v52, 1.442695
    %v54 = vpow.pop %v53
    %v55 = vsel %vm39, %v54, 0.0
    %56 = vadd.xlane.f32.xlu0 %v55
    %v57 = vpop.xlane.xlu0 %56
    %v58 = vlog2.pop %v57
    %v59 = vmul.f32 %v58, 0.6931472
    %v60 = vsub.f32 %v43, %v52
    %v61 = vmul.f32 %v45, %v60
    %v62 = vsel %vm39, %v61, 0.0
    %63 = vadd.xlane.f32.xlu0 %v62
    %v64 = vpop.xlane.xlu0 %63
    %v65 = vrcp.pop %v48
    %v66 = vmul.f32 %v64, %v65
    %v67 = vadd.f32 %v66, %v59
    %v68 = vlog2.pop %v48
    %v69 = vmul.f32 %v68, 0.6931472
    %v70 = vsub.f32 %v67, %v69
    %v71 = vmul.f32 %v70, 3.125
    %vm72 = vcmask 7168
    %73 = vst.msk [vmem:[%s2] sm:$0xff] %vm72, %v71
    // Predicated region
    $region18: #{tpu_custom_call.1} parent=1 // pred_check
      _
    $region19: #{tpu_custom_call.1} parent=1 // pred_check_branch
      %75 = sbr.rel (0) target = $region21
    $region20: #{tpu_custom_call.1} parent=1 // pred_region
      _
    $region21: #{tpu_custom_call.1} parent=1 // pred_fallthru
      _
    // Predicated region
    $region22: #{tpu_custom_call.1} parent=1 // pred_check
      _
    $region23: #{tpu_custom_call.1} parent=1 // pred_check_branch
      %77 = sbr.rel (0) target = $region25
    $region24: #{tpu_custom_call.1} parent=1 // pred_region
      _
    $region25: #{tpu_custom_call.1} parent=1 // pred_fallthru
      _
    %78 = vsyncpa [#allocation3], 1
    %79 = vsyncpa [#allocation5], 1

</llo_original>
